<compile_context>
chip_gen: v7x
topology: tpu7x:2x2x1
jax: 0.10.0
libtpu: 0.0.40
codegen_flags: <defaults>
</compile_context>

<pallas_src>
import jax
import jax.numpy as jnp
from jax import lax
from jax.experimental import pallas as pl
from jax.experimental.pallas import tpu as pltpu


def _gather_rows_kernel(ts_ref, u_ref, out_ref):
    """Single grid step: u_trj is VMEM-resident; gather B rows in-kernel.

    ts_ref  : SMEM (B,) int32  — scalar-prefetched gather indices (pre-clamped).
    u_ref   : VMEM (T, dim_u)  — full table, one bulk HBM->VMEM DMA.
    out_ref : VMEM (B, dim_u)  — dense output block, one HBM writeback.
    """
    B = out_ref.shape[0]

    def copy_row(b, carry):
        idx = ts_ref[b]                                     # scalar read (SMEM)
        out_ref[pl.ds(b, 1), :] = u_ref[pl.ds(idx, 1), :]   # VMEM row copy
        return carry

    # B is small and static -> unroll for LLO scheduler visibility.
    lax.fori_loop(0, B, copy_row, 0, unroll=True)


def ss_trajectory_gather(u_trj: jax.Array, ts) -> jax.Array:
    """Batched gather: u_trj[ts] of shape (B, dim_u) in one pallas_call /
    one grid step (no per-row HBM DMAs)."""
    T, dim_u = u_trj.shape
    ts = jnp.clip(jnp.asarray(ts).astype(jnp.int32).reshape(-1), 0, T - 1)
    B = ts.shape[0]

    return pl.pallas_call(
        _gather_rows_kernel,
        out_shape=jax.ShapeDtypeStruct((B, dim_u), u_trj.dtype),
        grid_spec=pltpu.PrefetchScalarGridSpec(
            num_scalar_prefetch=1,        # ts -> SMEM, drives the in-kernel gather
            grid=(1,),                    # single step: one bulk DMA, no per-row overhead
            # Blocks equal the full array dims (so the (8,128) rule is satisfied)
            # and the whole table / whole output are resident for the one step.
            in_specs=[pl.BlockSpec((T, dim_u), lambda i, ts_ref: (0, 0))],
            out_specs=pl.BlockSpec((B, dim_u), lambda i, ts_ref: (0, 0)),
        ),
        compiler_params=pltpu.CompilerParams(
            dimension_semantics=("arbitrary",)),
    )(ts, u_trj)


def ss_trajectory_forward(u_trj: jax.Array, t, *, use_pallas: bool = True):
    """Pallas equivalent of SSTrajectory.forward(t) -> (None, u_trj[t]).

    use_pallas=False routes the scalar-index gather to a fused XLA
    dynamic_slice (perf-review recommendation: a standalone custom call to
    move dim_u*4 bytes is dominated by launch/DMA latency and cannot fuse
    into the consumer).
    """
    T, dim_u = u_trj.shape
    t_idx = jnp.clip(jnp.asarray(t).astype(jnp.int32), 0, T - 1)
    if use_pallas:
        row = ss_trajectory_gather(u_trj, t_idx.reshape((1,)))[0]
    else:
        row = lax.dynamic_slice_in_dim(u_trj, t_idx, 1, axis=0)[0]
    # Match PyTorch: scalar index returns a 1-D (dim_u,) vector.
    return (None, row)


class SSTrajectoryPallas:
    """Thin parameter holder mirroring the PyTorch module."""

    def __init__(self, dim_x, dim_u, T, x0):
        self.dim_x = dim_x
        self.dim_u = dim_u
        self.T = T
        self.x0 = x0  # registered buffer in PyTorch; unused by forward
        # Matches PyTorch declare_parameters(): zeros((T, dim_u)).
        self.u_trj = jnp.zeros((T, dim_u), dtype=jnp.float32)

    def forward(self, t):
        # Pallas-backed (single grid step, one bulk DMA, in-VMEM gather).
        return ss_trajectory_forward(self.u_trj, t, use_pallas=True)

    def forward_fused(self, t):
        # Perf-review fast path for a bare scalar index: fused XLA slice.
        return ss_trajectory_forward(self.u_trj, t, use_pallas=False)

    def forward_batched(self, ts):
        # Preferred inside rollout loops: one kernel call for all timesteps.
        return ss_trajectory_gather(self.u_trj, ts)


if __name__ == "__main__":
    key = jax.random.PRNGKey(0)
    k_u, k_x0 = jax.random.split(key)

    dim_x, dim_u, T = 4, 4, 8
    x0 = jax.random.normal(k_x0, (dim_x,), dtype=jnp.float32)

    traj = SSTrajectoryPallas(dim_x, dim_u, T, x0)
    # PyTorch initializes u_trj to zeros; use deterministic random values here
    # so every row is distinguishable and the gather is actually tested.
    traj.u_trj = jax.random.normal(k_u, (T, dim_u), dtype=jnp.float32)

    # --- single-index forward, Pallas path (matches PyTorch forward(t)) ---
    t = 3
    none_out, u_t = traj.forward(t)
    u_t = jax.block_until_ready(u_t)
    assert none_out is None
    assert u_t.shape == (dim_u,)
    assert jnp.array_equal(u_t, traj.u_trj[t])

    # --- single-index forward, fused-XLA path (review recommendation) ---
    none_out2, u_t2 = traj.forward_fused(t)
    u_t2 = jax.block_until_ready(u_t2)
    assert none_out2 is None
    assert jnp.array_equal(u_t2, traj.u_trj[t])

    # --- batched forward: 8 rows in ONE grid step (sublane-dense output) ---
    ts = jnp.array([0, 3, 7, 5, 1, 6, 2, 4], dtype=jnp.int32)
    u_b = jax.block_until_ready(traj.forward_batched(ts))
    assert u_b.shape == (ts.shape[0], dim_u)
    assert jnp.array_equal(u_b, traj.u_trj[ts])

    print("KERNEL_OK")
</pallas_src>

<mosaic_0001>
module attributes {stable_mosaic.version = 11 : i64} {
  func.func @_gather_rows_kernel(%arg0: i32, %arg1: memref<1xi32, #tpu.memory_space<smem>>, %arg2: memref<8x4xf32, #tpu.memory_space<vmem>>, %arg3: memref<1x4xf32, #tpu.memory_space<vmem>>) attributes {dimension_semantics = [#tpu.dimension_semantics<arbitrary>], iteration_bounds = array<i64: 1>, scalar_prefetch = 1 : i64, scratch_operands = 0 : i64, tpu.core_type = #tpu.core_type<tc>, window_params = [{pipeline_mode = #tpu.pipeline_mode<synchronous>, transform_indices = @transform_0, window_bounds = array<i64: 8, 4>}, {pipeline_mode = #tpu.pipeline_mode<synchronous>, transform_indices = @transform_1, window_bounds = array<i64: 1, 4>}]} {
    %c0_i32 = arith.constant 0 : i32
    %0 = arith.index_cast %c0_i32 : i32 to index
    %1 = memref.load %arg1[%0] : memref<1xi32, #tpu.memory_space<smem>>
    %2 = arith.index_cast %1 : i32 to index
    %c0 = arith.constant 0 : index
    %3 = vector.load %arg2[%2, %c0] : memref<8x4xf32, #tpu.memory_space<vmem>>, vector<1x4xf32>
    %4 = arith.index_cast %c0_i32 : i32 to index
    %c0_0 = arith.constant 0 : index
    %5 = vector.load %arg3[%4, %c0_0] : memref<1x4xf32, #tpu.memory_space<vmem>>, vector<1x4xf32>
    tpu.vector_store %arg3[%4, %c0_0], %3 {strides = array<i32>} : memref<1x4xf32, #tpu.memory_space<vmem>>, vector<1x4xf32>,
    %c1_i32 = arith.constant 1 : i32
    return
  }
  func.func @transform_0(%arg0: i32, %arg1: memref<1xi32, #tpu.memory_space<smem>>) -> (i32, i32) {
    %c0_i32 = arith.constant 0 : i32
    %c0_i32_0 = arith.constant 0 : i32
    %c0_i32_1 = arith.constant 0 : i32
    return %c0_i32, %c0_i32_0 : i32, i32
  }
  func.func @transform_1(%arg0: i32, %arg1: memref<1xi32, #tpu.memory_space<smem>>) -> (i32, i32) {
    %c0_i32 = arith.constant 0 : i32
    %c0_i32_0 = arith.constant 0 : i32
    %c0_i32_1 = arith.constant 0 : i32
    return %c0_i32, %c0_i32_0 : i32, i32
  }
}

</mosaic_0001>

<llo_original>
// kernel: tpu_custom_call.1
$region0: #{tpu_custom_call.1}
  #allocation0 [shape = 'u32[]', space=smem, size = 0x4, offset = 0x4, fixed_abs, tag = 'smem constant byte address 0x4 - core index']
  #allocation1 [shape = 'u32[144,128]{1,0:T(1,128)}', space=vmem, size = 0x12000, scoped, tag = 'internal scratch']
  #allocation2 [shape = 's32[1]{0}', space=sflag, size = 0x4, scoped, tag = 'scoped memory for tpu_custom_call.1']
  #allocation3 [shape = 's32[1]{0:T(128)S(6)}', space=smem, size = 0x200, scoped, tag = 'prefetched SMEM operand 0']
  %s0 = inlined_call_operand.<no memory space> [shape: s32[1], index: 0, kind: input, shape index: {}]
  %s1 = inlined_call_operand.vmem [shape: f32[8,4], index: 1, kind: input, shape index: {}]
  %s2 = inlined_call_operand.hbm [shape: f32[1,4], index: 2, kind: output, shape index: {}]
  %s3 = sld [smem:[#allocation0]]
  $region14: #{tpu_custom_call.1} parent=0
    _
  %s5 = ssub.s32 1, %s3
  %s6 = scalar_select 0, %s5, %s3
  %7 = sst [smem:[#allocation3]] %s0
  $region1: #{tpu_custom_call.1} parent=0
    #allocation4 [shape = 'u8[512]{0}', space=vmem, size = 0x400, scoped, tag = 'output window, operand 0, single buffered']
    #allocation5 [shape = 's32[1]{0}', space=sflag, size = 0x4, scoped, tag = 'scoped memory for tpu_custom_call.1']
    %8 = vsyncpa [#allocation5], 0
    // Predicated region
    $region2: #{tpu_custom_call.1} parent=1 // pred_check
      _
    $region3: #{tpu_custom_call.1} parent=1 // pred_check_branch
      %10 = sbr.rel (0) target = $region5
    $region4: #{tpu_custom_call.1} parent=1 // pred_region
      _
    $region5: #{tpu_custom_call.1} parent=1 // pred_fallthru
      _
    %s11 = sld [smem:[#allocation3]]
    %s12 = scalar_lea.vmem %s1, %s11
    %v13 = vld [vmem:[%s12] sm:$0x1]
    %vm14 = vcmask 24576
    %15 = vst.msk [vmem:[#allocation4] sm:$0x1] %vm14, %v13
    // Predicated region
    $region6: #{tpu_custom_call.1} parent=1 // pred_check
      _
    $region7: #{tpu_custom_call.1} parent=1 // pred_check_branch
      %17 = sbr.rel (0) target = $region9
    $region8: #{tpu_custom_call.1} parent=1 // pred_region
      %s19 = ssub.s32 16, 16
      %20 = vsyncadd [#allocation5], %s19
      %s22 = sshll.u32 [#allocation4], 4
      %s23 = int_to_ptr.vmem [resolvable:$true] %s22
      %25 = dma.vmem_to_hbm [thread:$0]  %s23, 16, %s2, [#allocation5]
    $region9: #{tpu_custom_call.1} parent=1 // pred_fallthru
      _
    // Predicated region
    $region10: #{tpu_custom_call.1} parent=1 // pred_check
      _
    $region11: #{tpu_custom_call.1} parent=1 // pred_check_branch
      %27 = sbr.rel (0) target = $region13
    $region12: #{tpu_custom_call.1} parent=1 // pred_region
      %28 = dma.done [#allocation5], 16
    $region13: #{tpu_custom_call.1} parent=1 // pred_fallthru
      _
    %29 = vsyncpa [#allocation5], 1

</llo_original>
